<compile_context>
chip_gen: v7x
topology: tpu7x:2x2x1
jax: 0.10.0
libtpu: 0.0.40
codegen_flags: <defaults>
</compile_context>

<pallas_src>
import jax
import jax.numpy as jnp
from jax.experimental import pallas as pl
from jax.experimental.pallas import tpu as pltpu


_NEG_BIG = -1e30  # finite "minus infinity" so exp(m_old - m_new) never hits NaN


def _round_up(x, m):
    return (x + m - 1) // m * m


def gated_kernel(x_ref, bidx_ref, w_ref, b_ref, out_ref,
                 m_ref, denom_ref, acc_ref):
    """One node-tile step of the online segment-softmax gated readout."""
    i = pl.program_id(0)
    B, D = out_ref.shape
    TN = x_ref.shape[0]

    @pl.when(i == 0)
    def _init():
        m_ref[...] = jnp.full(m_ref.shape, _NEG_BIG, m_ref.dtype)
        denom_ref[...] = jnp.zeros(denom_ref.shape, denom_ref.dtype)
        acc_ref[...] = jnp.zeros(acc_ref.shape, acc_ref.dtype)

    x = x_ref[...]                    # [TN, D]
    w_row = w_ref[...]                # [1, D]  lane-dense weight row
    bias = b_ref[0]                   # scalar from SMEM

    # scores[0, n] = sum_d x[n, d] * w[d] + bias  -> lane-dense [1, TN]
    scores = jax.lax.dot_general(
        w_row, x,
        dimension_numbers=(((1,), (1,)), ((), ())),
        preferred_element_type=jnp.float32,
    ) + bias                                                       # [1, TN]

    # Segment membership mask in [B, TN]: graphs on sublanes, nodes on lanes.
    bidx = bidx_ref[...]                                           # [1, TN] i32
    seg = jax.lax.broadcasted_iota(jnp.int32, (B, TN), 0)          # [B, TN]
    mask = seg == bidx                                             # [B, TN] bool

    # Online (running) per-segment max.
    m_prev = m_ref[...]                                            # [B, 1]
    masked = jnp.where(mask, scores, _NEG_BIG)                     # [B, TN]
    m_tile = jnp.max(masked, axis=1, keepdims=True)                # [B, 1]
    m_new = jnp.maximum(m_prev, m_tile)                            # [B, 1]

    # Gather each node's segment max: m_node[0, n] = m_new[bidx[n]]
    # (0 for padded / out-of-range nodes, which are masked out below).
    m_node = jnp.sum(jnp.where(mask, m_new, 0.0), axis=0, keepdims=True)  # [1, TN]

    # One exp per node, masked afterwards (no inf/NaN intermediates).
    e_row = jnp.exp(scores - m_node)                               # [1, TN]
    e = jnp.where(mask, e_row, 0.0)                                # [B, TN]
    sum_e = jnp.sum(e, axis=1, keepdims=True)                      # [B, 1]

    # Unnormalized weighted sum: natural MXU contraction [B,TN] @ [TN,D].
    partial = jnp.dot(e.astype(x.dtype), x,
                      preferred_element_type=jnp.float32)          # [B, D]

    # Rescale previous partials to the new running max and accumulate.
    rescale = jnp.exp(m_prev - m_new)                              # [B, 1]
    acc_ref[...] = acc_ref[...] * rescale + partial
    denom_ref[...] = denom_ref[...] * rescale + sum_e
    m_ref[...] = m_new

    @pl.when(i == pl.num_programs(0) - 1)
    def _finalize():
        denom = denom_ref[...]
        # Empty segments (no nodes) -> denom == 0 -> output row 0, not NaN.
        denom_safe = jnp.where(denom > 0.0, denom, 1.0)
        # approx=True would run on the otherwise-idle EUP; exact kept here to
        # hold the tight reference tolerance (runs once per kernel, negligible).
        inv = pl.reciprocal(denom_safe, approx=False)              # [B, 1]
        out_ref[...] = (acc_ref[...] * inv).astype(out_ref.dtype)


def gated_forward(node_feats, batch_index, w, b, num_graphs, *, tn=512):
    """node_feats: [N, D], batch_index: [N] int, w: [D, 1], b: [1] -> [B, D] f32."""
    N, D = node_feats.shape
    B = int(num_graphs)
    dtype = node_feats.dtype

    # Pad feature dim to a lane-dense multiple of 128 and the node dim to a
    # whole number of tiles.  Tail nodes get segment id B (out of range) so
    # they are masked out of every graph.
    D_pad = _round_up(D, 128)
    tn = min(tn, _round_up(N, 128))
    N_pad = _round_up(N, tn)

    x = jnp.zeros((N_pad, D_pad), dtype).at[:N, :D].set(node_feats)
    bidx = jnp.full((1, N_pad), B, jnp.int32).at[0, :N].set(
        batch_index.astype(jnp.int32))
    w_row = jnp.zeros((1, D_pad), dtype).at[0, :D].set(
        w.reshape(-1).astype(dtype))
    b_s = b.reshape(1).astype(jnp.float32)

    out = pl.pallas_call(
        gated_kernel,
        out_shape=jax.ShapeDtypeStruct((B, D_pad), jnp.float32),
        grid_spec=pltpu.PrefetchScalarGridSpec(
            num_scalar_prefetch=0,
            grid=(N_pad // tn,),
            in_specs=[
                pl.BlockSpec((tn, D_pad), lambda i: (i, 0)),   # X node tile
                pl.BlockSpec((1, tn), lambda i: (0, i)),       # batch index tile
                pl.BlockSpec((1, D_pad), lambda i: (0, 0)),    # weight row (resident)
                pl.BlockSpec(memory_space=pltpu.MemorySpace.SMEM),  # bias scalar
            ],
            out_specs=pl.BlockSpec((B, D_pad), lambda i: (0, 0)),
            scratch_shapes=[
                pltpu.VMEM((B, 1), jnp.float32),       # running max m
                pltpu.VMEM((B, 1), jnp.float32),       # running denominator
                pltpu.VMEM((B, D_pad), jnp.float32),   # accumulator
            ],
        ),
        compiler_params=pltpu.CompilerParams(
            dimension_semantics=("arbitrary",)),
    )(x, bidx, w_row, b_s)

    return out[:, :D]


def gated_reference(node_feats, batch_index, w, b, num_graphs):
    """Plain-JAX reference for correctness checking."""
    scores = (node_feats @ w + b)[:, 0]                                  # [N]
    m = jax.ops.segment_max(scores, batch_index, num_segments=num_graphs)
    e = jnp.exp(scores - m[batch_index])
    denom = jax.ops.segment_sum(e, batch_index, num_segments=num_graphs)
    alpha = e / denom[batch_index]
    return jax.ops.segment_sum(alpha[:, None] * node_feats, batch_index,
                               num_segments=num_graphs)


if __name__ == "__main__":
    # Small synthetic shapes: N=200 nodes, D=32 hidden, B=4 graphs
    # (graph 3 intentionally empty to exercise the zero-denominator guard).
    N, D, B = 200, 32, 4

    key = jax.random.PRNGKey(0)
    k_x, k_i, k_w, k_b = jax.random.split(key, 4)

    node_feats = jax.random.normal(k_x, (N, D), dtype=jnp.float32)
    batch_index = jax.random.randint(k_i, (N,), 0, 3).astype(jnp.int32)

    # Deterministic nn.Linear(D, 1)-style init: U(-1/sqrt(D), 1/sqrt(D)).
    bound = 1.0 / (D ** 0.5)
    w = jax.random.uniform(k_w, (D, 1), minval=-bound, maxval=bound,
                           dtype=jnp.float32)
    b = jax.random.uniform(k_b, (1,), minval=-bound, maxval=bound,
                           dtype=jnp.float32)

    # tn=128 -> two node tiles, exercising the online (multi-step) softmax path.
    H = gated_forward(node_feats, batch_index, w, b, B, tn=128)
    H = jax.block_until_ready(H)

    H_ref = gated_reference(node_feats, batch_index, w, b, B)
    assert H.shape == (B, D)
    assert bool(jnp.all(jnp.isfinite(H)))
    assert jnp.allclose(H, H_ref, atol=1e-5, rtol=1e-4), (H, H_ref)

    print("KERNEL_OK")
</pallas_src>

<mosaic_0001>
module attributes {stable_mosaic.version = 11 : i64} {
  func.func @gated_kernel(%arg0: i32, %arg1: memref<128x128xf32, #tpu.memory_space<vmem>>, %arg2: memref<1x128xi32, #tpu.memory_space<vmem>>, %arg3: memref<1x128xf32, #tpu.memory_space<vmem>>, %arg4: memref<1xf32, #tpu.memory_space<smem>>, %arg5: memref<4x128xf32, #tpu.memory_space<vmem>>, %arg6: memref<4x1xf32, #tpu.memory_space<vmem>>, %arg7: memref<4x1xf32, #tpu.memory_space<vmem>>, %arg8: memref<4x128xf32, #tpu.memory_space<vmem>>) attributes {dimension_semantics = [#tpu.dimension_semantics<arbitrary>], iteration_bounds = array<i64: 2>, scalar_prefetch = 0 : i64, scratch_operands = 3 : i64, tpu.core_type = #tpu.core_type<tc>, window_params = [{transform_indices = @transform_0, window_bounds = array<i64: 128, 128>}, {transform_indices = @transform_1, window_bounds = array<i64: 1, 128>}, {pipeline_mode = #tpu.pipeline_mode<synchronous>, transform_indices = @transform_2, window_bounds = array<i64: 1, 128>}, {transform_indices = @transform_3, window_bounds = array<i64: 1>}, {pipeline_mode = #tpu.pipeline_mode<synchronous>, transform_indices = @transform_4, window_bounds = array<i64: 4, 128>}]} {
    %c0_i32 = arith.constant 0 : i32
    %0 = arith.cmpi eq, %arg0, %c0_i32 : i32
    %1 = arith.extui %0 : i1 to i32
    %c0_i32_0 = arith.constant 0 : i32
    %2 = arith.cmpi ne, %1, %c0_i32_0 : i32
    scf.if %2 {
      %cst_27 = arith.constant -1.000000e+30 : f32
      %51 = vector.broadcast %cst_27 : f32 to vector<4x1xf32>
      %c0_28 = arith.constant 0 : index
      %c0_29 = arith.constant 0 : index
      %52 = vector.load %arg6[%c0_28, %c0_29] : memref<4x1xf32, #tpu.memory_space<vmem>>, vector<4x1xf32>
      tpu.vector_store %arg6[%c0_28, %c0_29], %51 {strides = array<i32>} : memref<4x1xf32, #tpu.memory_space<vmem>>, vector<4x1xf32>,
      %cst_30 = arith.constant 0.000000e+00 : f32
      %53 = vector.broadcast %cst_30 : f32 to vector<4x1xf32>
      %c0_31 = arith.constant 0 : index
      %c0_32 = arith.constant 0 : index
      %54 = vector.load %arg7[%c0_31, %c0_32] : memref<4x1xf32, #tpu.memory_space<vmem>>, vector<4x1xf32>
      tpu.vector_store %arg7[%c0_31, %c0_32], %53 {strides = array<i32>} : memref<4x1xf32, #tpu.memory_space<vmem>>, vector<4x1xf32>,
      %cst_33 = arith.constant 0.000000e+00 : f32
      %55 = vector.broadcast %cst_33 : f32 to vector<4x128xf32>
      %c0_34 = arith.constant 0 : index
      %c0_35 = arith.constant 0 : index
      %56 = vector.load %arg8[%c0_34, %c0_35] : memref<4x128xf32, #tpu.memory_space<vmem>>, vector<4x128xf32>
      tpu.vector_store %arg8[%c0_34, %c0_35], %55 {strides = array<i32>} : memref<4x128xf32, #tpu.memory_space<vmem>>, vector<4x128xf32>,
    } else {
    }
    %c0 = arith.constant 0 : index
    %c0_1 = arith.constant 0 : index
    %3 = vector.load %arg1[%c0, %c0_1] : memref<128x128xf32, #tpu.memory_space<vmem>>, vector<128x128xf32>
    %c0_2 = arith.constant 0 : index
    %c0_3 = arith.constant 0 : index
    %4 = vector.load %arg3[%c0_2, %c0_3] : memref<1x128xf32, #tpu.memory_space<vmem>>, vector<1x128xf32>
    %c0_4 = arith.constant 0 : index
    %5 = memref.load %arg4[%c0_4] : memref<1xf32, #tpu.memory_space<smem>>
    %cst = arith.constant dense<0.000000e+00> : vector<1x128xf32>
    %6 = tpu.matmul %4, %3, %cst {dimension_numbers = #tpu.dot_dimension_numbers<[1], [1], [0], [0], [0, 0, 1, 0], [], []>} : vector<1x128xf32>, vector<128x128xf32>, vector<1x128xf32> -> vector<1x128xf32>
    %7 = vector.broadcast %5 : f32 to vector<1x128xf32>
    %8 = arith.addf %6, %7 : vector<1x128xf32>
    %c0_5 = arith.constant 0 : index
    %c0_6 = arith.constant 0 : index
    %9 = vector.load %arg2[%c0_5, %c0_6] : memref<1x128xi32, #tpu.memory_space<vmem>>, vector<1x128xi32>
    %10 = tpu.iota {dimensions = array<i32: 0>} : vector<4x128xi32>
    %11 = vector.broadcast %9 : vector<1x128xi32> to vector<4x128xi32>
    %12 = arith.cmpi eq, %10, %11 : vector<4x128xi32>
    %c0_7 = arith.constant 0 : index
    %c0_8 = arith.constant 0 : index
    %13 = vector.load %arg6[%c0_7, %c0_8] : memref<4x1xf32, #tpu.memory_space<vmem>>, vector<4x1xf32>
    %cst_9 = arith.constant -1.000000e+30 : f32
    %14 = vector.shape_cast %8 : vector<1x128xf32> to vector<1x128xf32>
    %15 = vector.broadcast %14 : vector<1x128xf32> to vector<4x128xf32>
    %16 = vector.broadcast %cst_9 : f32 to vector<4x128xf32>
    %17 = arith.select %12, %15, %16 : vector<4x128xi1>, vector<4x128xf32>
    %cst_10 = arith.constant dense<0xFF800000> : vector<4xf32>
    %18 = vector.multi_reduction <maximumf>, %17, %cst_10 [1] : vector<4x128xf32> to vector<4xf32>
    %19 = vector.shape_cast %18 : vector<4xf32> to vector<4x1xf32>
    %20 = arith.maximumf %13, %19 : vector<4x1xf32>
    %cst_11 = arith.constant 0.000000e+00 : f32
    %21 = vector.shape_cast %20 : vector<4x1xf32> to vector<4x1xf32>
    %22 = vector.broadcast %21 : vector<4x1xf32> to vector<4x128xf32>
    %23 = vector.broadcast %cst_11 : f32 to vector<4x128xf32>
    %24 = arith.select %12, %22, %23 : vector<4x128xi1>, vector<4x128xf32>
    %cst_12 = arith.constant dense<0.000000e+00> : vector<128xf32>
    %25 = vector.multi_reduction <add>, %24, %cst_12 [0] : vector<4x128xf32> to vector<128xf32>
    %26 = vector.shape_cast %25 : vector<128xf32> to vector<1x128xf32>
    %27 = arith.subf %8, %26 : vector<1x128xf32>
    %28 = math.exp %27 : vector<1x128xf32>
    %cst_13 = arith.constant 0.000000e+00 : f32
    %29 = vector.shape_cast %28 : vector<1x128xf32> to vector<1x128xf32>
    %30 = vector.broadcast %29 : vector<1x128xf32> to vector<4x128xf32>
    %31 = vector.broadcast %cst_13 : f32 to vector<4x128xf32>
    %32 = arith.select %12, %30, %31 : vector<4x128xi1>, vector<4x128xf32>
    %cst_14 = arith.constant dense<0.000000e+00> : vector<4xf32>
    %33 = vector.multi_reduction <add>, %32, %cst_14 [1] : vector<4x128xf32> to vector<4xf32>
    %34 = vector.shape_cast %33 : vector<4xf32> to vector<4x1xf32>
    %cst_15 = arith.constant dense<0.000000e+00> : vector<4x128xf32>
    %35 = tpu.matmul %32, %3, %cst_15 {dimension_numbers = #tpu.dot_dimension_numbers<[1], [0], [0], [1], [0, 0, 1, 1], [], []>} : vector<4x128xf32>, vector<128x128xf32>, vector<4x128xf32> -> vector<4x128xf32>
    %36 = arith.subf %13, %20 : vector<4x1xf32>
    %37 = math.exp %36 : vector<4x1xf32>
    %c0_16 = arith.constant 0 : index
    %c0_17 = arith.constant 0 : index
    %38 = vector.load %arg8[%c0_16, %c0_17] : memref<4x128xf32, #tpu.memory_space<vmem>>, vector<4x128xf32>
    %39 = vector.broadcast %37 : vector<4x1xf32> to vector<4x128xf32>
    %40 = arith.mulf %38, %39 : vector<4x128xf32>
    %41 = arith.addf %40, %35 : vector<4x128xf32>
    %c0_18 = arith.constant 0 : index
    %c0_19 = arith.constant 0 : index
    %42 = vector.load %arg8[%c0_18, %c0_19] : memref<4x128xf32, #tpu.memory_space<vmem>>, vector<4x128xf32>
    tpu.vector_store %arg8[%c0_18, %c0_19], %41 {strides = array<i32>} : memref<4x128xf32, #tpu.memory_space<vmem>>, vector<4x128xf32>,
    %c0_20 = arith.constant 0 : index
    %c0_21 = arith.constant 0 : index
    %43 = vector.load %arg7[%c0_20, %c0_21] : memref<4x1xf32, #tpu.memory_space<vmem>>, vector<4x1xf32>
    %44 = arith.mulf %43, %37 : vector<4x1xf32>
    %45 = arith.addf %44, %34 : vector<4x1xf32>
    %c0_22 = arith.constant 0 : index
    %c0_23 = arith.constant 0 : index
    %46 = vector.load %arg7[%c0_22, %c0_23] : memref<4x1xf32, #tpu.memory_space<vmem>>, vector<4x1xf32>
    tpu.vector_store %arg7[%c0_22, %c0_23], %45 {strides = array<i32>} : memref<4x1xf32, #tpu.memory_space<vmem>>, vector<4x1xf32>,
    %c0_24 = arith.constant 0 : index
    %c0_25 = arith.constant 0 : index
    %47 = vector.load %arg6[%c0_24, %c0_25] : memref<4x1xf32, #tpu.memory_space<vmem>>, vector<4x1xf32>
    tpu.vector_store %arg6[%c0_24, %c0_25], %20 {strides = array<i32>} : memref<4x1xf32, #tpu.memory_space<vmem>>, vector<4x1xf32>,
    %c1_i32 = arith.constant 1 : i32
    %48 = arith.cmpi eq, %arg0, %c1_i32 : i32
    %49 = arith.extui %48 : i1 to i32
    %c0_i32_26 = arith.constant 0 : i32
    %50 = arith.cmpi ne, %49, %c0_i32_26 : i32
    scf.if %50 {
      %c0_27 = arith.constant 0 : index
      %c0_28 = arith.constant 0 : index
      %51 = vector.load %arg7[%c0_27, %c0_28] : memref<4x1xf32, #tpu.memory_space<vmem>>, vector<4x1xf32>
      %cst_29 = arith.constant 0.000000e+00 : f32
      %52 = vector.broadcast %cst_29 : f32 to vector<4x1xf32>
      %53 = arith.cmpf ogt, %51, %52 : vector<4x1xf32>
      %cst_30 = arith.constant 1.000000e+00 : f32
      %54 = vector.broadcast %cst_30 : f32 to vector<4x1xf32>
      %55 = arith.select %53, %51, %54 : vector<4x1xi1>, vector<4x1xf32>
      %56 = tpu.reciprocal %55 : vector<4x1xf32> -> vector<4x1xf32>
      %c0_31 = arith.constant 0 : index
      %c0_32 = arith.constant 0 : index
      %57 = vector.load %arg8[%c0_31, %c0_32] : memref<4x128xf32, #tpu.memory_space<vmem>>, vector<4x128xf32>
      %58 = vector.broadcast %56 : vector<4x1xf32> to vector<4x128xf32>
      %59 = arith.mulf %57, %58 : vector<4x128xf32>
      %c0_33 = arith.constant 0 : index
      %c0_34 = arith.constant 0 : index
      %60 = vector.load %arg5[%c0_33, %c0_34] : memref<4x128xf32, #tpu.memory_space<vmem>>, vector<4x128xf32>
      tpu.vector_store %arg5[%c0_33, %c0_34], %59 {strides = array<i32>} : memref<4x128xf32, #tpu.memory_space<vmem>>, vector<4x128xf32>,
    } else {
    }
    return
  }
  func.func @transform_0(%arg0: i32) -> (i32, i32) {
    %c0_i32 = arith.constant 0 : i32
    %c0_i32_0 = arith.constant 0 : i32
    return %arg0, %c0_i32 : i32, i32
  }
  func.func @transform_1(%arg0: i32) -> (i32, i32) {
    %c0_i32 = arith.constant 0 : i32
    %c0_i32_0 = arith.constant 0 : i32
    return %c0_i32, %arg0 : i32, i32
  }
  func.func @transform_2(%arg0: i32) -> (i32, i32) {
    %c0_i32 = arith.constant 0 : i32
    %c0_i32_0 = arith.constant 0 : i32
    %c0_i32_1 = arith.constant 0 : i32
    return %c0_i32, %c0_i32_0 : i32, i32
  }
  func.func @transform_3(%arg0: i32) -> i32 {
    %c0_i32 = arith.constant 0 : i32
    %c0_i32_0 = arith.constant 0 : i32
    return %c0_i32 : i32
  }
  func.func @transform_4(%arg0: i32) -> (i32, i32) {
    %c0_i32 = arith.constant 0 : i32
    %c0_i32_0 = arith.constant 0 : i32
    %c0_i32_1 = arith.constant 0 : i32
    return %c0_i32, %c0_i32_0 : i32, i32
  }
}

</mosaic_0001>

<llo_original>
// kernel: tpu_custom_call.1
$region0: #{tpu_custom_call.1}
  #allocation0 [shape = 'u32[]', space=smem, size = 0x4, offset = 0x4, fixed_abs, tag = 'smem constant byte address 0x4 - core index']
  #allocation1 [shape = 'u32[144,128]{1,0:T(1,128)}', space=vmem, size = 0x12000, scoped, tag = 'internal scratch']
  #allocation2 [shape = 'f32[4,1]{1,0:T(4,128)}', space=vmem, size = 0x800, scoped, tag = 'scratch operand']
  #allocation3 [shape = 'f32[4,1]{1,0:T(4,128)}', space=vmem, size = 0x800, scoped, tag = 'scratch operand']
  #allocation4 [shape = 'f32[4,128]{1,0:T(4,128)}', space=vmem, size = 0x800, scoped, tag = 'scratch operand']
  #allocation5 [shape = 'f32[1]{0:T(128)S(6)}', space=smem, size = 0x200, scoped, tag = 'scoped memory for tpu_custom_call.1']
  %s0 = inlined_call_operand.hbm [shape: f32[256,128], index: 0, kind: input, shape index: {}]
  %s1 = inlined_call_operand.vmem [shape: s32[1,256], index: 1, kind: input, shape index: {}]
  %s2 = inlined_call_operand.vmem [shape: f32[1,128], index: 2, kind: input, shape index: {}]
  %s3 = inlined_call_operand.<no memory space> [shape: f32[1], index: 3, kind: input, shape index: {}]
  %s4 = inlined_call_operand.hbm [shape: f32[4,128], index: 4, kind: output, shape index: {}]
  %s5 = sld [smem:[#allocation0]]
  $region61: #{tpu_custom_call.1} parent=0
    _
  %s7 = ssub.s32 1, %s5
  %s8 = scalar_select 0, %s7, %s5
  %9 = sst [smem:[#allocation5]] %s3
  $region1: #{tpu_custom_call.1} parent=0
    #allocation6 [shape = 'u8[131072]{0}', space=vmem, size = 0x20000, scoped, tag = 'input window, operand 0']
    #allocation7 [shape = 's32[2]{0}', space=sflag, size = 0x8, scoped, tag = 'scoped memory for tpu_custom_call.1']
    #allocation8 [shape = 's32[2]{0}', space=sflag, size = 0x8, scoped, tag = 'scoped memory for tpu_custom_call.1']
    #allocation9 [shape = 'u8[2048]{0}', space=vmem, size = 0x800, scoped, tag = 'output window, operand 0, single buffered']
    %10 = vsyncpa [#allocation7], 0
    %s11 = scalar_lea.sflag [#allocation7], 1
    %12 = vsyncpa %s11, 0
    %13 = vsyncpa [#allocation8], 0
    loop: start=0, step=1, limit=4
    $region2: #{tpu_custom_call.1} parent=1 // loop_pre_header
      _
    $region3: #{tpu_custom_call.1} parent=1 // loop_header
      %s15 = sphi 0, %s19
      %p16 = scmp.ge.s32.totalorder %s15, 4
      %s25 = sphi 0, %s27
      %s28 = sphi 0, %s25
      %s29 = sphi 0, %s28
      %s45 = sphi 0, %s29
      %s51 = sphi 0, %s53
      %s54 = sphi 0, %s51
      %s55 = sphi 0, %s54
      %s71 = sphi 0, %s55
      %s75 = sphi 0, %s75
      %s77 = sphi 0, %s75
      %s78 = sphi 0, %s77
      %s92 = sphi 0, %s78
      %s96 = sphi 0, %s96
      %s98 = sphi 0, %s96
      %s99 = sphi 0, %s98
      %s113 = sphi 0, %s99
      %s117 = sphi 0, %s117
      %s119 = sphi 0, %s117
      %s120 = sphi 0, %s119
      %s134 = sphi 0, %s120
    $region4: #{tpu_custom_call.1} parent=1 // loop_header_branch
      %18 = sbr.rel (%p16) target = $region8
    $region5: #{tpu_custom_call.1} parent=1 // loop_body
      %s20 = ssub.s32 %s15, 1
      %s21 = ssub.s32 %s15, 2
      %s22 = sadd.s32 %s15, 1
      %s23 = ssub.s32 %s15, %s22
      %p24 = scmp.eq.s32.totalorder %s23, 0
      %s26 = sadd.s32 %s25, 1
      %s27 = scalar_select %p24, %s25, %s26
      %p30 = pneg %p24
      %p31 = scmp.eq.s32.totalorder %s15, 1
      %p32 = por %p30, %p31
      %p33 = scmp.ne.s32.totalorder %s25, %s28
      %p34 = scmp.eq.s32.totalorder %s15, 0
      %p35 = por %p33, %p34
      %p36 = scmp.ne.s32.totalorder %s25, %s28
      %p37 = scmp.eq.s32.totalorder %s20, 1
      %p38 = por %p36, %p37
      %p39 = scmp.ne.s32.totalorder %s28, %s29
      %p40 = scmp.eq.s32.totalorder %s20, 0
      %p41 = por %p39, %p40
      %p42 = scmp.ne.s32.totalorder %s28, %s29
      %p43 = scmp.eq.s32.totalorder %s21, 1
      %p44 = por %p42, %p43
      %p46 = scmp.ne.s32.totalorder %s29, %s45
      %p47 = scmp.eq.s32.totalorder %s21, 0
      %p48 = por %p46, %p47
      %s49 = ssub.s32 %s15, %s22
      %p50 = scmp.eq.s32.totalorder %s49, 0
      %s52 = sadd.s32 %s51, 1
      %s53 = scalar_select %p50, %s51, %s52
      %p56 = pneg %p50
      %p57 = scmp.eq.s32.totalorder %s15, 1
      %p58 = por %p56, %p57
      %p59 = scmp.ne.s32.totalorder %s51, %s54
      %p60 = scmp.eq.s32.totalorder %s15, 0
      %p61 = por %p59, %p60
      %p62 = scmp.ne.s32.totalorder %s51, %s54
      %p63 = scmp.eq.s32.totalorder %s20, 1
      %p64 = por %p62, %p63
      %p65 = scmp.ne.s32.totalorder %s54, %s55
      %p66 = scmp.eq.s32.totalorder %s20, 0
      %p67 = por %p65, %p66
      %p68 = scmp.ne.s32.totalorder %s54, %s55
      %p69 = scmp.eq.s32.totalorder %s21, 1
      %p70 = por %p68, %p69
      %p72 = scmp.ne.s32.totalorder %s55, %s71
      %p73 = scmp.eq.s32.totalorder %s21, 0
      %p74 = por %p72, %p73
      %s76 = sadd.s32 %s75, 1
      %p79 = scmp.eq.s32.totalorder %s15, 1
      %p80 = scmp.ne.s32.totalorder %s75, %s77
      %p81 = scmp.eq.s32.totalorder %s15, 0
      %p82 = por %p80, %p81
      %p83 = scmp.ne.s32.totalorder %s75, %s77
      %p84 = scmp.eq.s32.totalorder %s20, 1
      %p85 = por %p83, %p84
      %p86 = scmp.ne.s32.totalorder %s77, %s78
      %p87 = scmp.eq.s32.totalorder %s20, 0
      %p88 = por %p86, %p87
      %p89 = scmp.ne.s32.totalorder %s77, %s78
      %p90 = scmp.eq.s32.totalorder %s21, 1
      %p91 = por %p89, %p90
      %p93 = scmp.ne.s32.totalorder %s78, %s92
      %p94 = scmp.eq.s32.totalorder %s21, 0
      %p95 = por %p93, %p94
      %s97 = sadd.s32 %s96, 1
      %p100 = scmp.eq.s32.totalorder %s15, 1
      %p101 = scmp.ne.s32.totalorder %s96, %s98
      %p102 = scmp.eq.s32.totalorder %s15, 0
      %p103 = por %p101, %p102
      %p104 = scmp.ne.s32.totalorder %s96, %s98
      %p105 = scmp.eq.s32.totalorder %s20, 1
      %p106 = por %p104, %p105
      %p107 = scmp.ne.s32.totalorder %s98, %s99
      %p108 = scmp.eq.s32.totalorder %s20, 0
      %p109 = por %p107, %p108
      %p110 = scmp.ne.s32.totalorder %s98, %s99
      %p111 = scmp.eq.s32.totalorder %s21, 1
      %p112 = por %p110, %p111
      %p114 = scmp.ne.s32.totalorder %s99, %s113
      %p115 = scmp.eq.s32.totalorder %s21, 0
      %p116 = por %p114, %p115
      %s118 = sadd.s32 %s117, 1
      %p121 = scmp.eq.s32.totalorder %s15, 1
      %p122 = scmp.ne.s32.totalorder %s117, %s119
      %p123 = scmp.eq.s32.totalorder %s15, 0
      %p124 = por %p122, %p123
      %p125 = scmp.ne.s32.totalorder %s117, %s119
      %p126 = scmp.eq.s32.totalorder %s20, 1
      %p127 = por %p125, %p126
      %p128 = scmp.ne.s32.totalorder %s119, %s120
      %p129 = scmp.eq.s32.totalorder %s20, 0
      %p130 = por %p128, %p129
      %p131 = scmp.ne.s32.totalorder %s119, %s120
      %p132 = scmp.eq.s32.totalorder %s21, 1
      %p133 = por %p131, %p132
      %p135 = scmp.ne.s32.totalorder %s120, %s134
      %p136 = scmp.eq.s32.totalorder %s21, 0
      %p137 = por %p135, %p136
      %p138 = scmp.le.s32.totalorder 1, %s15
      %p139 = scmp.lt.s32.totalorder %s15, 3
      %p140 = pnand %p138, %p139
      %p141 = pneg %p140
      // Predicated region
      $region9: #{tpu_custom_call.1} parent=5 // pred_check
        _
      $region10: #{tpu_custom_call.1} parent=5 // pred_check_branch
        %143 = sbr.rel (%p140) target = $region12
      $region11: #{tpu_custom_call.1} parent=5 // pred_region
        %s144 = ssub.s32 %s15, 1
        // Predicated region
        $region13: #{tpu_custom_call.1} parent=11 // pred_check
          %p145 = pneg %p88
        $region14: #{tpu_custom_call.1} parent=11 // pred_check_branch
          %147 = sbr.rel (%p145) target = $region16
        $region15: #{tpu_custom_call.1} parent=11 // pred_region
          _
        $region16: #{tpu_custom_call.1} parent=11 // pred_fallthru
          _
        // Predicated region
        $region17: #{tpu_custom_call.1} parent=11 // pred_check
          %p148 = pneg %p109
        $region18: #{tpu_custom_call.1} parent=11 // pred_check_branch
          %150 = sbr.rel (%p148) target = $region20
        $region19: #{tpu_custom_call.1} parent=11 // pred_region
          _
        $region20: #{tpu_custom_call.1} parent=11 // pred_fallthru
          _
      $region12: #{tpu_custom_call.1} parent=5 // pred_fallthru
        _
      %p151 = scmp.lt.s32.totalorder %s15, 2
      // Predicated region
      $region21: #{tpu_custom_call.1} parent=5 // pred_check
        %p152 = pneg %p151
      $region22: #{tpu_custom_call.1} parent=5 // pred_check_branch
        %154 = sbr.rel (%p152) target = $region24
      $region23: #{tpu_custom_call.1} parent=5 // pred_region
        // Predicated region
        $region25: #{tpu_custom_call.1} parent=23 // pred_check
          %p155 = pneg %p35
        $region26: #{tpu_custom_call.1} parent=23 // pred_check_branch
          %157 = sbr.rel (%p155) target = $region28
        $region27: #{tpu_custom_call.1} parent=23 // pred_region
          %s158 = sand.u32 %s25, 1
          %s159 = scalar_lea.sflag [#allocation7], %s158
          %s160 = sand.u32 %s25, 1
          %s161 = smul.addr %s160, 128
          %s162 = scalar_lea.vmem [#allocation6], %s161
          %s163 = smul.u32 16, %s15
          %s165 = ssub.s32 2048, 2048
          %166 = vsyncadd %s159, %s165
          %s167 = smul.addr %s163, 128
          %s168 = scalar_lea.hbm %s0, %s167
          %s169 = sshll.u32 %s162, 4
          %s170 = int_to_ptr.vmem [resolvable:$true] %s169
          %175 = dma.hbm_to_vmem [thread:$0]  %s168, 2048, %s170, %s159, 128, 128, 8
        $region28: #{tpu_custom_call.1} parent=23 // pred_fallthru
          _
        // Predicated region
        $region29: #{tpu_custom_call.1} parent=23 // pred_check
          %p176 = pneg %p61
        $region30: #{tpu_custom_call.1} parent=23 // pred_check_branch
          %178 = sbr.rel (%p176) target = $region32
        $region31: #{tpu_custom_call.1} parent=23 // pred_region
          %p179 = scmp.lt.s32.totalorder %s15, 1
          %s180 = scalar_select %p179, %s15, 1
          %s181 = scalar_lea.vmem %s1, %s180
        $region32: #{tpu_custom_call.1} parent=23 // pred_fallthru
          _
      $region24: #{tpu_custom_call.1} parent=5 // pred_fallthru
        _
      %p182 = scmp.le.s32.totalorder 1, %s15
      %p183 = scmp.lt.s32.totalorder %s15, 3
      %p184 = pnand %p182, %p183
      %p185 = pneg %p184
      // Predicated region
      $region33: #{tpu_custom_call.1} parent=5 // pred_check
        _
      $region34: #{tpu_custom_call.1} parent=5 // pred_check_branch
        %187 = sbr.rel (%p184) target = $region36
      $region35: #{tpu_custom_call.1} parent=5 // pred_region
        %s188 = ssub.s32 %s15, 1
        %s189 = sand.u32 %s28, 1
        %s190 = scalar_lea.sflag [#allocation7], %s189
        %s191 = sand.u32 %s28, 1
        %s192 = smul.addr %s191, 128
        %s193 = scalar_lea.vmem [#allocation6], %s192
        // Predicated region
        $region37: #{tpu_custom_call.1} parent=35 // pred_check
          %p194 = pneg %p41
        $region38: #{tpu_custom_call.1} parent=35 // pred_check_branch
          %196 = sbr.rel (%p194) target = $region40
        $region39: #{tpu_custom_call.1} parent=35 // pred_region
          %197 = dma.done %s190, 2048
        $region40: #{tpu_custom_call.1} parent=35 // pred_fallthru
          _
        %s198 = sand.u32 %s28, 1
        %s199 = scalar_lea.sflag [#allocation7], %s198
        %s200 = sand.u32 %s28, 1
        %s201 = smul.addr %s200, 128
        %s202 = scalar_lea.vmem [#allocation6], %s201
        %p203 = pneg %p41
        %p204 = pneg %p38
        %p205 = scmp.lt.s32.totalorder %s20, 1
        %s206 = scalar_select %p205, %s20, 1
        %s207 = scalar_lea.vmem %s1, %s206
        %p208 = pneg %p67
        %p209 = pneg %p64
        %p210 = pneg %p88
        %p211 = pneg %p85
        %p212 = pneg %p109
        %p213 = pneg %p106
        %p214 = pneg %p130
        %p215 = pneg %p127
        %s216 = smul.u32 16, %s20
        %p217 = scmp.lt.s32.totalorder %s20, 1
        %s218 = scalar_select %p217, %s20, 1
        %s219 = scalar_lea.vmem %s1, %s218
        %p220 = scmp.eq.s32.totalorder %s20, 0
        // Predicated region
        $region41: #{tpu_custom_call.1} parent=35 // pred_check
          %p221 = pneg %p220
        $region42: #{tpu_custom_call.1} parent=35 // pred_check_branch
          %223 = sbr.rel (%p221) target = $region44
        $region43: #{tpu_custom_call.1} parent=35 // pred_region
          %vm224 = vcmask 3072
          %225 = vst.msk [vmem:[#allocation2] sm:$0xf] %vm224, -1e+30
          %226 = vst.msk [vmem:[#allocation3] sm:$0xf] %vm224, 0.0
          %227 = vst [vmem:[#allocation4] sm:$0xf] 0.0
        $region44: #{tpu_custom_call.1} parent=35 // pred_fallthru
          _
        %v228 = vld [vmem:[%s193] sm:$0xff]
        %v229 = vld [vmem:[%s193 + $0x8] sm:$0xff]
        %v230 = vld [vmem:[%s193 + $0x10] sm:$0xff]
        %v231 = vld [vmem:[%s193 + $0x18] sm:$0xff]
        %v232 = vld [vmem:[%s193 + $0x20] sm:$0xff]
        %v233 = vld [vmem:[%s193 + $0x28] sm:$0xff]
        %v234 = vld [vmem:[%s193 + $0x30] sm:$0xff]
        %v235 = vld [vmem:[%s193 + $0x38] sm:$0xff]
        %v236 = vld [vmem:[%s193 + $0x40] sm:$0xff]
        %v237 = vld [vmem:[%s193 + $0x48] sm:$0xff]
        %v238 = vld [vmem:[%s193 + $0x50] sm:$0xff]
        %v239 = vld [vmem:[%s193 + $0x58] sm:$0xff]
        %v240 = vld [vmem:[%s193 + $0x60] sm:$0xff]
        %v241 = vld [vmem:[%s193 + $0x68] sm:$0xff]
        %v242 = vld [vmem:[%s193 + $0x70] sm:$0xff]
        %v243 = vld [vmem:[%s193 + $0x78] sm:$0xff]
        %v244 = vld [vmem:[%s2] sm:$0x1]
        %s245 = sld [smem:[#allocation5]]
        %v246 = vstv %s245
        %247 = vmatprep.subr.mxu0 0.0
        %248 = vmatpush1.xpose.msra.mxu0 %v228
        %249 = vmatprep.subr.mxu0 0.0
        %250 = vmatpush1.xpose.msra.mxu0 %v229
        %251 = vmatprep.subr.mxu0 0.0
        %252 = vmatpush1.xpose.msra.mxu0 %v230
        %253 = vmatprep.subr.mxu0 0.0
        %254 = vmatpush1.xpose.msra.mxu0 %v231
        %255 = vmatprep.subr.mxu0 0.0
        %256 = vmatpush1.xpose.msra.mxu0 %v232
        %257 = vmatprep.subr.mxu0 0.0
        %258 = vmatpush1.xpose.msra.mxu0 %v233
        %259 = vmatprep.subr.mxu0 0.0
        %260 = vmatpush1.xpose.msra.mxu0 %v234
        %261 = vmatprep.subr.mxu0 0.0
        %262 = vmatpush1.xpose.msra.mxu0 %v235
        %263 = vmatprep.subr.mxu0 0.0
        %264 = vmatpush1.xpose.msra.mxu0 %v236
        %265 = vmatprep.subr.mxu0 0.0
        %266 = vmatpush1.xpose.msra.mxu0 %v237
        %267 = vmatprep.subr.mxu0 0.0
        %268 = vmatpush1.xpose.msra.mxu0 %v238
        %269 = vmatprep.subr.mxu0 0.0
        %270 = vmatpush1.xpose.msra.mxu0 %v239
        %271 = vmatprep.subr.mxu0 0.0
        %272 = vmatpush1.xpose.msra.mxu0 %v240
        %273 = vmatprep.subr.mxu0 0.0
        %274 = vmatpush1.xpose.msra.mxu0 %v241
        %275 = vmatprep.subr.mxu0 0.0
        %276 = vmatpush1.xpose.msra.mxu0 %v242
        %277 = vmatprep.subr.mxu0 0.0
        %278 = vmatpush1.xpose.msra.mxu0 %v243
        %279 = vmatprep.subr.mxu0 0.0
        %280 = vmatpush1.xpose.msra.mxu0 0.0
        %281 = vmatprep.subr.mxu0 0.0
        %282 = vmatpush1.xpose.msra.mxu0 0.0
        %283 = vmatprep.subr.mxu0 0.0
        %284 = vmatpush1.xpose.msra.mxu0 0.0
        %285 = vmatprep.subr.mxu0 0.0
        %286 = vmatpush1.xpose.msra.mxu0 0.0
        %287 = vmatprep.subr.mxu0 0.0
        %288 = vmatpush1.xpose.msra.mxu0 0.0
        %289 = vmatprep.subr.mxu0 0.0
        %290 = vmatpush1.xpose.msra.mxu0 0.0
        %291 = vmatprep.subr.mxu0 0.0
        %292 = vmatpush1.xpose.msra.mxu0 0.0
        %293 = vmatprep.subr.mxu0 0.0
        %294 = vmatpush1.xpose.msra.mxu0 0.0
        %295 = vmatprep.subr.mxu0 0.0
        %296 = vmatpush1.xpose.msra.mxu0 0.0
        %297 = vmatprep.subr.mxu0 0.0
        %298 = vmatpush1.xpose.msra.mxu0 0.0
        %299 = vmatprep.subr.mxu0 0.0
        %300 = vmatpush1.xpose.msra.mxu0 0.0
        %301 = vmatprep.subr.mxu0 0.0
        %302 = vmatpush1.xpose.msra.mxu0 0.0
        %303 = vmatprep.subr.mxu0 0.0
        %304 = vmatpush1.xpose.msra.mxu0 0.0
        %305 = vmatprep.subr.mxu0 0.0
        %306 = vmatpush1.xpose.msra.mxu0 0.0
        %307 = vmatprep.subr.mxu0 0.0
        %308 = vmatpush1.xpose.msra.mxu0 0.0
        %309 = vmatprep.subr.mxu0 0.0
        %310 = vmatpush1.xpose.msra.mxu0 0.0
        %311 = vmatprep.mubr.f32.mxu0 0.0
        %312 = vmatmul.mubr.f32.gmra.mrb[0].mxu0 %v244
        %v313 = vpop.f32.mrb[0].mxu0
        %v314 = vadd.f32 %v246, %v313
        %v315 = vpop.f32.mrb[0].mxu0
        %316 = vdwg.mxu0
        %v317 = vld [vmem:[%s219] sm:$0x1]
        %v318 = vlaneseq
        %v319 = vshrl.u32 %v318, 7
        %v320 = vlaneseq
        %v321 = vshrl.u32 %v320, 7
        %v322 = vsub.s32 0, %v321
        %v323 = vrot.slane %v317, %v322
        %vm324 = vcmp.eq.s32.totalorder %v319, %v323
        %v325 = vld [vmem:[#allocation2] sm:$0xf]
        %v326 = vlaneseq
        %v327 = vshrl.u32 %v326, 7
        %v328 = vsub.s32 0, %v327
        %v329 = vrot.slane %v314, %v328
        %v330 = vsel %vm324, %v329, -1e+30
        %vm331 = vcmask 1043456
        %v332 = vsel %vm331, %v330, -inf
        %333 = vmax.xlane.f32.xlu0 %v332
        %v334 = vpop.xlane.xlu0 %333
        %v335 = vmax.f32 %v325, %v334
        %337 = vset.pattern.permute.xlu0 0
        %338 = vperm.xlu0 %337, %v335
        %v339 = vpop.permute.xlu0 %338
        %v341 = vsel %vm324, %v339, 0.0
        %v342 = vsel %vm331, %v341, 0.0
        %v343 = vrot.slane %v342, 4
        %v344 = vadd.f32 %v342, %v343
        %v345 = vrot.slane %v344, 2
        %v346 = vadd.f32 %v344, %v345
        %v347 = vrot.slane %v346, 1
        %v348 = vadd.f32 %v346, %v347
        %v349 = vsub.f32 %v314, %v348
        %v350 = vmul.f32 %v349, 1.442695
        %v351 = vpow.pop %v350
        %v352 = vlaneseq
        %v353 = vshrl.u32 %v352, 7
        %v354 = vsub.s32 0, %v353
        %v355 = vrot.slane %v351, %v354
        %v356 = vsel %vm324, %v355, 0.0
        %v357 = vsel %vm331, %v356, 0.0
        %358 = vadd.xlane.f32.xlu0 %v357
        %v359 = vpop.xlane.xlu0 %358
        %360 = vmatprep.subr.mxu0 0.0
        %361 = vmatpush1.msra.mxu0 %v228
        %362 = vmatprep.subr.mxu0 0.0
        %363 = vmatpush1.msra.mxu0 %v229
        %364 = vmatprep.subr.mxu0 0.0
        %365 = vmatpush1.msra.mxu0 %v230
        %366 = vmatprep.subr.mxu0 0.0
        %367 = vmatpush1.msra.mxu0 %v231
        %368 = vmatprep.subr.mxu0 0.0
        %369 = vmatpush1.msra.mxu0 %v232
        %370 = vmatprep.subr.mxu0 0.0
        %371 = vmatpush1.msra.mxu0 %v233
        %372 = vmatprep.subr.mxu0 0.0
        %373 = vmatpush1.msra.mxu0 %v234
        %374 = vmatprep.subr.mxu0 0.0
        %375 = vmatpush1.msra.mxu0 %v235
        %376 = vmatprep.subr.mxu0 0.0
        %377 = vmatpush1.msra.mxu0 %v236
        %378 = vmatprep.subr.mxu0 0.0
        %379 = vmatpush1.msra.mxu0 %v237
        %380 = vmatprep.subr.mxu0 0.0
        %381 = vmatpush1.msra.mxu0 %v238
        %382 = vmatprep.subr.mxu0 0.0
        %383 = vmatpush1.msra.mxu0 %v239
        %384 = vmatprep.subr.mxu0 0.0
        %385 = vmatpush1.msra.mxu0 %v240
        %386 = vmatprep.subr.mxu0 0.0
        %387 = vmatpush1.msra.mxu0 %v241
        %388 = vmatprep.subr.mxu0 0.0
        %389 = vmatpush1.msra.mxu0 %v242
        %390 = vmatprep.subr.mxu0 0.0
        %391 = vmatpush1.msra.mxu0 %v243
        %392 = vmatprep.subr.mxu0 0.0
        %393 = vmatpush1.msra.mxu0 0.0
        %394 = vmatprep.subr.mxu0 0.0
        %395 = vmatpush1.msra.mxu0 0.0
        %396 = vmatprep.subr.mxu0 0.0
        %397 = vmatpush1.msra.mxu0 0.0
        %398 = vmatprep.subr.mxu0 0.0
        %399 = vmatpush1.msra.mxu0 0.0
        %400 = vmatprep.subr.mxu0 0.0
        %401 = vmatpush1.msra.mxu0 0.0
        %402 = vmatprep.subr.mxu0 0.0
        %403 = vmatpush1.msra.mxu0 0.0
        %404 = vmatprep.subr.mxu0 0.0
        %405 = vmatpush1.msra.mxu0 0.0
        %406 = vmatprep.subr.mxu0 0.0
        %407 = vmatpush1.msra.mxu0 0.0
        %408 = vmatprep.subr.mxu0 0.0
        %409 = vmatpush1.msra.mxu0 0.0
        %410 = vmatprep.subr.mxu0 0.0
        %411 = vmatpush1.msra.mxu0 0.0
        %412 = vmatprep.subr.mxu0 0.0
        %413 = vmatpush1.msra.mxu0 0.0
        %414 = vmatprep.subr.mxu0 0.0
        %415 = vmatpush1.msra.mxu0 0.0
        %416 = vmatprep.subr.mxu0 0.0
        %417 = vmatpush1.msra.mxu0 0.0
        %418 = vmatprep.subr.mxu0 0.0
        %419 = vmatpush1.msra.mxu0 0.0
        %420 = vmatprep.subr.mxu0 0.0
        %421 = vmatpush1.msra.mxu0 0.0
        %422 = vmatprep.subr.mxu0 0.0
        %423 = vmatpush1.msra.mxu0 0.0
        %424 = vmatprep.mubr.f32.mxu0 0.0
        %425 = vmatmul.mubr.f32.gmra.mrb[0].mxu0 %v356
        %v426 = vpop.f32.mrb[0].mxu0
        %v427 = vadd.f32 0.0, %v426
        %v428 = vpop.f32.mrb[0].mxu0
        %429 = vdwg.mxu0
        %v430 = vsub.f32 %v325, %v335
        %v431 = vmul.f32 %v430, 1.442695
        %v432 = vpow.pop %v431
        %v433 = vld [vmem:[#allocation4] sm:$0xf]
        %435 = vset.pattern.permute.xlu0 0
        %436 = vperm.xlu0 %435, %v432
        %v437 = vpop.permute.xlu0 %436
        %v439 = vmul.f32 %v433, %v437
        %v440 = vadd.f32 %v439, %v427
        %441 = vst [vmem:[#allocation4] sm:$0xf] %v440
        %v442 = vld [vmem:[#allocation3] sm:$0xf]
        %v443 = vmul.f32 %v442, %v432
        %v444 = vadd.f32 %v443, %v359
        %vm445 = vcmask 3072
        %446 = vst.msk [vmem:[#allocation3] sm:$0xf] %vm445, %v444
        %447 = vst.msk [vmem:[#allocation2] sm:$0xf] %vm445, %v335
        %p448 = scmp.eq.s32.totalorder %s20, 1
        // Predicated region
        $region45: #{tpu_custom_call.1} parent=35 // pred_check
          %p449 = pneg %p448
        $region46: #{tpu_custom_call.1} parent=35 // pred_check_branch
          %451 = sbr.rel (%p449) target = $region48
        $region47: #{tpu_custom_call.1} parent=35 // pred_region
          %v452 = vld [vmem:[#allocation3] sm:$0xf]
          %vm453 = vcmp.gt.f32.partialorder %v452, 0.0
          %v454 = vsel %vm453, %v452, 1.0
          %v455 = vrcp.pop %v454
          %v456 = vld [vmem:[#allocation4] sm:$0xf]
          %458 = vset.pattern.permute.xlu0 0
          %459 = vperm.xlu0 %458, %v455
          %v460 = vpop.permute.xlu0 %459
          %v462 = vmul.f32 %v456, %v460
          %463 = vst [vmem:[#allocation9] sm:$0xf] %v462
        $region48: #{tpu_custom_call.1} parent=35 // pred_fallthru
          _
        // Predicated region
        $region49: #{tpu_custom_call.1} parent=35 // pred_check
          %p464 = pneg %p127
        $region50: #{tpu_custom_call.1} parent=35 // pred_check_branch
          %466 = sbr.rel (%p464) target = $region52
        $region51: #{tpu_custom_call.1} parent=35 // pred_region
          %s468 = ssub.s32 64, 64
          %469 = vsyncadd [#allocation8], %s468
          %s471 = sshll.u32 [#allocation9], 4
          %s472 = int_to_ptr.vmem [resolvable:$true] %s471
          %474 = dma.vmem_to_hbm [thread:$0]  %s472, 64, %s4, [#allocation8]
        $region52: #{tpu_custom_call.1} parent=35 // pred_fallthru
          _
        // Predicated region
        $region53: #{tpu_custom_call.1} parent=35 // pred_check
          %p475 = pneg %p127
        $region54: #{tpu_custom_call.1} parent=35 // pred_check_branch
          %477 = sbr.rel (%p475) target = $region56
        $region55: #{tpu_custom_call.1} parent=35 // pred_region
          %478 = dma.done [#allocation8], 64
        $region56: #{tpu_custom_call.1} parent=35 // pred_fallthru
          _
      $region36: #{tpu_custom_call.1} parent=5 // pred_fallthru
        _
      %p479 = scmp.le.s32.totalorder 2, %s15
      // Predicated region
      $region57: #{tpu_custom_call.1} parent=5 // pred_check
        %p480 = pneg %p479
      $region58: #{tpu_custom_call.1} parent=5 // pred_check_branch
        %482 = sbr.rel (%p480) target = $region60
      $region59: #{tpu_custom_call.1} parent=5 // pred_region
        %s483 = ssub.s32 %s15, 2
      $region60: #{tpu_custom_call.1} parent=5 // pred_fallthru
        _
    $region6: #{tpu_custom_call.1} parent=1 // loop_footer
      %s19 = sadd.s32 1, %s15
    $region7: #{tpu_custom_call.1} parent=1 // loop_footer_branch
      %14 = sbr.rel target = $region3
    $region8: #{tpu_custom_call.1} parent=1 // loop_exit
      _
    %484 = vsyncpa [#allocation7], 1
    %s485 = scalar_lea.sflag [#allocation7], 1
    %486 = vsyncpa %s485, 1
    %487 = vsyncpa [#allocation8], 1
    %s488 = scalar_lea.sflag [#allocation8], 1
    %489 = vsyncpa %s488, 1

</llo_original>
